<compile_context>
chip_gen: v7x
topology: tpu7x:2x2x1
jax: 0.10.0
libtpu: 0.0.40
codegen_flags: <defaults>
</compile_context>

<pallas_src>
import jax
import jax.numpy as jnp
from jax.experimental import pallas as pl
from jax.experimental.pallas import tpu as pltpu

_LANES = 128
_SUBLANES = 8
_SLAB = _LANES * _SUBLANES        # 1024 pixels: padding granularity
_MAX_SUBLANE_TILE = 1024          # 1024 sublanes * 128 lanes per block


def colorcal_kernel(idx_ref, rgb_ref, cal_ref, out_ref):
    """One channels-first tile of pixels.

    idx_ref: (1, S, 128) int32  camera index per pixel
    rgb_ref: (3, S, 128)        input colors
    cal_ref: (n_cams, 6) f32    [r_s,g_s,b_s,r_o,g_o,b_o]; identity camera's
                                row already replaced by [1,1,1,0,0,0]
                                (resident across the whole grid)
    out_ref: (3, S, 128)        calibrated colors
    """
    n_cams = cal_ref.shape[0]
    idx = idx_ref[0]                      # (S, 128) int32
    cal = cal_ref[...]                    # (n_cams, 6) float32

    # Per-pixel camera masks, computed once and reused for all 3 channels.
    masks = [idx == c for c in range(n_cams)]

    # TODO(synk): for large rigs (n_cams >~ 16) swap the unrolled VPU
    # compare/select chain for a one-hot MXU contraction against cal.
    for ch in range(3):
        x = rgb_ref[ch].astype(jnp.float32)               # (S, 128)
        scale = jnp.ones_like(x)      # out-of-range idx -> identity
        offset = jnp.zeros_like(x)
        for c in range(n_cams):
            scale = jnp.where(masks[c], cal[c:c + 1, ch:ch + 1], scale)
            offset = jnp.where(masks[c], cal[c:c + 1, ch + 3:ch + 4], offset)
        out_ref[ch] = (x * scale + offset).astype(out_ref.dtype)


def _pick_sublane_tile(m_rows, sublane_tile=None, target_steps=8,
                       max_tile=_MAX_SUBLANE_TILE):
    """Sublane tile: ~target_steps grid steps, multiple of 8, capped."""
    if sublane_tile is None:
        sublane_tile = pl.cdiv(pl.cdiv(m_rows, target_steps),
                               _SUBLANES) * _SUBLANES
    sublane_tile = max(_SUBLANES, (int(sublane_tile) // _SUBLANES) * _SUBLANES)
    return int(min(sublane_tile, max_tile))


def color_cal_apply_cf(idx_cf, rgb_cf, cal_eff, sublane_tile=None):
    """Channels-first fast path (zero relayout).

    idx_cf: (1, M, 128) int32, rgb_cf: (3, M, 128), cal_eff: (n_cams, 6) f32.
    """
    _, m_rows, lanes = rgb_cf.shape
    assert lanes == _LANES
    n_cams = cal_eff.shape[0]
    s_tile = _pick_sublane_tile(m_rows, sublane_tile)
    grid = (pl.cdiv(m_rows, s_tile),)   # last block may be partial: clamped DMA

    return pl.pallas_call(
        colorcal_kernel,
        out_shape=jax.ShapeDtypeStruct(rgb_cf.shape, rgb_cf.dtype),
        grid=grid,
        in_specs=[
            pl.BlockSpec((1, s_tile, _LANES), lambda i: (0, i, 0)),   # idx
            pl.BlockSpec((3, s_tile, _LANES), lambda i: (0, i, 0)),   # rgb
            pl.BlockSpec((n_cams, 6), lambda i: (0, 0)),              # resident cal
        ],
        out_specs=pl.BlockSpec((3, s_tile, _LANES), lambda i: (0, i, 0)),
        compiler_params=pltpu.CompilerParams(
            dimension_semantics=("parallel",)),
    )(idx_cf, rgb_cf, cal_eff)


def color_cal_forward(rgb_map, cam_idxs, cal, identity_cam=0, sublane_tile=None):
    """Pallas-backed ColorCal.forward for (N, 3) row-major pixels.

    rgb_map:  (N, 3) float
    cam_idxs: (N,) int, or None ('batch is None' path -> identity camera)
    cal:      (n_cams, 6) float parameter [r_s, g_s, b_s, r_o, g_o, b_o]
    """
    N = rgb_map.shape[0]
    out_dtype = rgb_map.dtype
    if cam_idxs is None:
        cam_idxs = jnp.full((N,), identity_cam, jnp.int32)

    # Fold the identity-camera blend into the table (exactly the PyTorch
    # mask/blend, since the mask is true iff cam_idx == identity_cam).
    identity_row = jnp.array([1.0, 1.0, 1.0, 0.0, 0.0, 0.0], dtype=cal.dtype)
    cal_eff = cal.at[identity_cam].set(identity_row).astype(jnp.float32)

    # Pad only to 1024-pixel slab granularity so M (sublane rows) is a
    # multiple of 8; any coarser tiling mismatch is absorbed by Pallas'
    # partial-block clamping, not by extra padding copies.
    n_pad = pl.cdiv(N, _SLAB) * _SLAB
    m_rows = n_pad // _LANES

    # Single fused pad+transpose+reshape into the dense channels-first slab.
    # (Pipelines that already keep rays channels-first should call
    #  color_cal_apply_cf directly and skip this relayout entirely.)
    rgb_cf = (jnp.zeros((3, n_pad), out_dtype)
              .at[:, :N].set(rgb_map.T)
              .reshape(3, m_rows, _LANES))
    idx_cf = (jnp.full((1, n_pad), identity_cam, jnp.int32)
              .at[0, :N].set(cam_idxs.astype(jnp.int32))
              .reshape(1, m_rows, _LANES))

    out_cf = color_cal_apply_cf(idx_cf, rgb_cf, cal_eff, sublane_tile)
    return out_cf.reshape(3, n_pad)[:, :N].T


def color_cal_reference(rgb_map, cam_idxs, cal, identity_cam=0):
    """Plain-JAX reference mirroring the PyTorch code."""
    identity = jnp.array([[1.0, 1.0, 1.0, 0.0, 0.0, 0.0]], dtype=cal.dtype)
    masks = (cam_idxs == identity_cam).astype(cal.dtype).reshape(-1, 1)
    cal_sel = cal[cam_idxs] * (1.0 - masks) + identity * masks
    return rgb_map * cal_sel[:, :3] + cal_sel[:, 3:]


if __name__ == "__main__":
    key = jax.random.PRNGKey(0)
    k1, k2, k3, k4, k5 = jax.random.split(key, 5)

    n_cams = 4
    identity_cam = 0

    # Parameter init: identity calibration plus a small perturbation.
    base = jnp.tile(jnp.array([[1.0, 1.0, 1.0, 0.0, 0.0, 0.0]], jnp.float32),
                    (n_cams, 1))
    cal = base + 0.1 * jax.random.normal(k1, (n_cams, 6), jnp.float32)

    # Case 1: N not a multiple of 128 -> exercises the padded tail.
    N = 300
    rgb_map = jax.random.uniform(k2, (N, 3), jnp.float32)
    cam_idxs = jax.random.randint(k3, (N,), 0, n_cams, jnp.int32)
    out = jax.block_until_ready(
        color_cal_forward(rgb_map, cam_idxs, cal, identity_cam=identity_cam))
    ref = color_cal_reference(rgb_map, cam_idxs, cal, identity_cam=identity_cam)
    assert out.shape == (N, 3)
    assert jnp.allclose(out, ref, atol=1e-5, rtol=1e-5)

    # Case 2: multi-step grid (default tile) and a forced partial last
    # sublane block (sublane_tile=16 over 24 sublane rows).
    N2 = 2400
    rgb2 = jax.random.uniform(k4, (N2, 3), jnp.float32)
    idx2 = jax.random.randint(k5, (N2,), 0, n_cams, jnp.int32)
    ref2 = color_cal_reference(rgb2, idx2, cal, identity_cam=identity_cam)
    out2_default = jax.block_until_ready(
        color_cal_forward(rgb2, idx2, cal, identity_cam=identity_cam))
    assert jnp.allclose(out2_default, ref2, atol=1e-5, rtol=1e-5)
    out2_partial = jax.block_until_ready(
        color_cal_forward(rgb2, idx2, cal, identity_cam=identity_cam,
                          sublane_tile=16))
    assert jnp.allclose(out2_partial, ref2, atol=1e-5, rtol=1e-5)

    # Case 3: 'batch is None' path -> identity camera -> passthrough.
    out_id = jax.block_until_ready(
        color_cal_forward(rgb_map, None, cal, identity_cam=identity_cam))
    assert jnp.allclose(out_id, rgb_map, atol=1e-5, rtol=1e-5)

    print("KERNEL_OK")
</pallas_src>

<mosaic_0001>
module attributes {stable_mosaic.version = 11 : i64} {
  func.func @colorcal_kernel(%arg0: i32, %arg1: memref<1x8x128xi32, #tpu.memory_space<vmem>>, %arg2: memref<3x8x128xf32, #tpu.memory_space<vmem>>, %arg3: memref<4x6xf32, #tpu.memory_space<vmem>>, %arg4: memref<3x8x128xf32, #tpu.memory_space<vmem>>) attributes {dimension_semantics = [#tpu.dimension_semantics<parallel>], iteration_bounds = array<i64: 1>, scalar_prefetch = 0 : i64, scratch_operands = 0 : i64, tpu.core_type = #tpu.core_type<tc>, window_params = [{transform_indices = @transform_0, window_bounds = array<i64: 1, 8, 128>}, {transform_indices = @transform_1, window_bounds = array<i64: 3, 8, 128>}, {pipeline_mode = #tpu.pipeline_mode<synchronous>, transform_indices = @transform_2, window_bounds = array<i64: 4, 6>}, {transform_indices = @transform_3, window_bounds = array<i64: 3, 8, 128>}]} {
    %c0 = arith.constant 0 : index
    %c0_0 = arith.constant 0 : index
    %c0_1 = arith.constant 0 : index
    %0 = vector.load %arg1[%c0, %c0_0, %c0_1] : memref<1x8x128xi32, #tpu.memory_space<vmem>>, vector<1x8x128xi32>
    %1 = vector.shape_cast %0 : vector<1x8x128xi32> to vector<8x128xi32>
    %c0_2 = arith.constant 0 : index
    %c0_3 = arith.constant 0 : index
    %2 = vector.load %arg3[%c0_2, %c0_3] : memref<4x6xf32, #tpu.memory_space<vmem>>, vector<4x6xf32>
    %c0_i32 = arith.constant 0 : i32
    %3 = vector.broadcast %c0_i32 : i32 to vector<8x128xi32>
    %4 = arith.cmpi eq, %1, %3 : vector<8x128xi32>
    %c1_i32 = arith.constant 1 : i32
    %5 = vector.broadcast %c1_i32 : i32 to vector<8x128xi32>
    %6 = arith.cmpi eq, %1, %5 : vector<8x128xi32>
    %c2_i32 = arith.constant 2 : i32
    %7 = vector.broadcast %c2_i32 : i32 to vector<8x128xi32>
    %8 = arith.cmpi eq, %1, %7 : vector<8x128xi32>
    %c3_i32 = arith.constant 3 : i32
    %9 = vector.broadcast %c3_i32 : i32 to vector<8x128xi32>
    %10 = arith.cmpi eq, %1, %9 : vector<8x128xi32>
    %c0_4 = arith.constant 0 : index
    %c0_5 = arith.constant 0 : index
    %c0_6 = arith.constant 0 : index
    %11 = vector.load %arg2[%c0_4, %c0_5, %c0_6] : memref<3x8x128xf32, #tpu.memory_space<vmem>>, vector<1x8x128xf32>
    %12 = vector.shape_cast %11 : vector<1x8x128xf32> to vector<8x128xf32>
    %cst = arith.constant 1.000000e+00 : f32
    %13 = vector.broadcast %cst : f32 to vector<8x128xf32>
    %cst_7 = arith.constant 0.000000e+00 : f32
    %14 = vector.broadcast %cst_7 : f32 to vector<8x128xf32>
    %15 = vector.extract_strided_slice %2 {offsets = [0, 0], sizes = [1, 1], strides = [1, 1]} : vector<4x6xf32> to vector<1x1xf32>
    %16 = vector.shape_cast %15 : vector<1x1xf32> to vector<1x1xf32>
    %17 = vector.broadcast %16 : vector<1x1xf32> to vector<8x128xf32>
    %18 = arith.select %4, %17, %13 : vector<8x128xi1>, vector<8x128xf32>
    %19 = vector.extract_strided_slice %2 {offsets = [0, 3], sizes = [1, 1], strides = [1, 1]} : vector<4x6xf32> to vector<1x1xf32>
    %20 = vector.shape_cast %19 : vector<1x1xf32> to vector<1x1xf32>
    %21 = vector.broadcast %20 : vector<1x1xf32> to vector<8x128xf32>
    %22 = arith.select %4, %21, %14 : vector<8x128xi1>, vector<8x128xf32>
    %23 = vector.extract_strided_slice %2 {offsets = [1, 0], sizes = [1, 1], strides = [1, 1]} : vector<4x6xf32> to vector<1x1xf32>
    %24 = vector.shape_cast %23 : vector<1x1xf32> to vector<1x1xf32>
    %25 = vector.broadcast %24 : vector<1x1xf32> to vector<8x128xf32>
    %26 = arith.select %6, %25, %18 : vector<8x128xi1>, vector<8x128xf32>
    %27 = vector.extract_strided_slice %2 {offsets = [1, 3], sizes = [1, 1], strides = [1, 1]} : vector<4x6xf32> to vector<1x1xf32>
    %28 = vector.shape_cast %27 : vector<1x1xf32> to vector<1x1xf32>
    %29 = vector.broadcast %28 : vector<1x1xf32> to vector<8x128xf32>
    %30 = arith.select %6, %29, %22 : vector<8x128xi1>, vector<8x128xf32>
    %31 = vector.extract_strided_slice %2 {offsets = [2, 0], sizes = [1, 1], strides = [1, 1]} : vector<4x6xf32> to vector<1x1xf32>
    %32 = vector.shape_cast %31 : vector<1x1xf32> to vector<1x1xf32>
    %33 = vector.broadcast %32 : vector<1x1xf32> to vector<8x128xf32>
    %34 = arith.select %8, %33, %26 : vector<8x128xi1>, vector<8x128xf32>
    %35 = vector.extract_strided_slice %2 {offsets = [2, 3], sizes = [1, 1], strides = [1, 1]} : vector<4x6xf32> to vector<1x1xf32>
    %36 = vector.shape_cast %35 : vector<1x1xf32> to vector<1x1xf32>
    %37 = vector.broadcast %36 : vector<1x1xf32> to vector<8x128xf32>
    %38 = arith.select %8, %37, %30 : vector<8x128xi1>, vector<8x128xf32>
    %39 = vector.extract_strided_slice %2 {offsets = [3, 0], sizes = [1, 1], strides = [1, 1]} : vector<4x6xf32> to vector<1x1xf32>
    %40 = vector.shape_cast %39 : vector<1x1xf32> to vector<1x1xf32>
    %41 = vector.broadcast %40 : vector<1x1xf32> to vector<8x128xf32>
    %42 = arith.select %10, %41, %34 : vector<8x128xi1>, vector<8x128xf32>
    %43 = vector.extract_strided_slice %2 {offsets = [3, 3], sizes = [1, 1], strides = [1, 1]} : vector<4x6xf32> to vector<1x1xf32>
    %44 = vector.shape_cast %43 : vector<1x1xf32> to vector<1x1xf32>
    %45 = vector.broadcast %44 : vector<1x1xf32> to vector<8x128xf32>
    %46 = arith.select %10, %45, %38 : vector<8x128xi1>, vector<8x128xf32>
    %47 = arith.mulf %12, %42 : vector<8x128xf32>
    %48 = arith.addf %47, %46 : vector<8x128xf32>
    %c0_8 = arith.constant 0 : index
    %c0_9 = arith.constant 0 : index
    %c0_10 = arith.constant 0 : index
    %49 = vector.load %arg4[%c0_8, %c0_9, %c0_10] : memref<3x8x128xf32, #tpu.memory_space<vmem>>, vector<1x8x128xf32>
    %50 = vector.shape_cast %49 : vector<1x8x128xf32> to vector<8x128xf32>
    %51 = vector.shape_cast %48 : vector<8x128xf32> to vector<1x8x128xf32>
    tpu.vector_store %arg4[%c0_8, %c0_9, %c0_10], %51 {strides = array<i32>} : memref<3x8x128xf32, #tpu.memory_space<vmem>>, vector<1x8x128xf32>,
    %c1 = arith.constant 1 : index
    %c0_11 = arith.constant 0 : index
    %c0_12 = arith.constant 0 : index
    %52 = vector.load %arg2[%c1, %c0_11, %c0_12] : memref<3x8x128xf32, #tpu.memory_space<vmem>>, vector<1x8x128xf32>
    %53 = vector.shape_cast %52 : vector<1x8x128xf32> to vector<8x128xf32>
    %cst_13 = arith.constant 1.000000e+00 : f32
    %54 = vector.broadcast %cst_13 : f32 to vector<8x128xf32>
    %cst_14 = arith.constant 0.000000e+00 : f32
    %55 = vector.broadcast %cst_14 : f32 to vector<8x128xf32>
    %56 = vector.extract_strided_slice %2 {offsets = [0, 1], sizes = [1, 1], strides = [1, 1]} : vector<4x6xf32> to vector<1x1xf32>
    %57 = vector.shape_cast %56 : vector<1x1xf32> to vector<1x1xf32>
    %58 = vector.broadcast %57 : vector<1x1xf32> to vector<8x128xf32>
    %59 = arith.select %4, %58, %54 : vector<8x128xi1>, vector<8x128xf32>
    %60 = vector.extract_strided_slice %2 {offsets = [0, 4], sizes = [1, 1], strides = [1, 1]} : vector<4x6xf32> to vector<1x1xf32>
    %61 = vector.shape_cast %60 : vector<1x1xf32> to vector<1x1xf32>
    %62 = vector.broadcast %61 : vector<1x1xf32> to vector<8x128xf32>
    %63 = arith.select %4, %62, %55 : vector<8x128xi1>, vector<8x128xf32>
    %64 = vector.extract_strided_slice %2 {offsets = [1, 1], sizes = [1, 1], strides = [1, 1]} : vector<4x6xf32> to vector<1x1xf32>
    %65 = vector.shape_cast %64 : vector<1x1xf32> to vector<1x1xf32>
    %66 = vector.broadcast %65 : vector<1x1xf32> to vector<8x128xf32>
    %67 = arith.select %6, %66, %59 : vector<8x128xi1>, vector<8x128xf32>
    %68 = vector.extract_strided_slice %2 {offsets = [1, 4], sizes = [1, 1], strides = [1, 1]} : vector<4x6xf32> to vector<1x1xf32>
    %69 = vector.shape_cast %68 : vector<1x1xf32> to vector<1x1xf32>
    %70 = vector.broadcast %69 : vector<1x1xf32> to vector<8x128xf32>
    %71 = arith.select %6, %70, %63 : vector<8x128xi1>, vector<8x128xf32>
    %72 = vector.extract_strided_slice %2 {offsets = [2, 1], sizes = [1, 1], strides = [1, 1]} : vector<4x6xf32> to vector<1x1xf32>
    %73 = vector.shape_cast %72 : vector<1x1xf32> to vector<1x1xf32>
    %74 = vector.broadcast %73 : vector<1x1xf32> to vector<8x128xf32>
    %75 = arith.select %8, %74, %67 : vector<8x128xi1>, vector<8x128xf32>
    %76 = vector.extract_strided_slice %2 {offsets = [2, 4], sizes = [1, 1], strides = [1, 1]} : vector<4x6xf32> to vector<1x1xf32>
    %77 = vector.shape_cast %76 : vector<1x1xf32> to vector<1x1xf32>
    %78 = vector.broadcast %77 : vector<1x1xf32> to vector<8x128xf32>
    %79 = arith.select %8, %78, %71 : vector<8x128xi1>, vector<8x128xf32>
    %80 = vector.extract_strided_slice %2 {offsets = [3, 1], sizes = [1, 1], strides = [1, 1]} : vector<4x6xf32> to vector<1x1xf32>
    %81 = vector.shape_cast %80 : vector<1x1xf32> to vector<1x1xf32>
    %82 = vector.broadcast %81 : vector<1x1xf32> to vector<8x128xf32>
    %83 = arith.select %10, %82, %75 : vector<8x128xi1>, vector<8x128xf32>
    %84 = vector.extract_strided_slice %2 {offsets = [3, 4], sizes = [1, 1], strides = [1, 1]} : vector<4x6xf32> to vector<1x1xf32>
    %85 = vector.shape_cast %84 : vector<1x1xf32> to vector<1x1xf32>
    %86 = vector.broadcast %85 : vector<1x1xf32> to vector<8x128xf32>
    %87 = arith.select %10, %86, %79 : vector<8x128xi1>, vector<8x128xf32>
    %88 = arith.mulf %53, %83 : vector<8x128xf32>
    %89 = arith.addf %88, %87 : vector<8x128xf32>
    %c1_15 = arith.constant 1 : index
    %c0_16 = arith.constant 0 : index
    %c0_17 = arith.constant 0 : index
    %90 = vector.load %arg4[%c1_15, %c0_16, %c0_17] : memref<3x8x128xf32, #tpu.memory_space<vmem>>, vector<1x8x128xf32>
    %91 = vector.shape_cast %90 : vector<1x8x128xf32> to vector<8x128xf32>
    %92 = vector.shape_cast %89 : vector<8x128xf32> to vector<1x8x128xf32>
    tpu.vector_store %arg4[%c1_15, %c0_16, %c0_17], %92 {strides = array<i32>} : memref<3x8x128xf32, #tpu.memory_space<vmem>>, vector<1x8x128xf32>,
    %c2 = arith.constant 2 : index
    %c0_18 = arith.constant 0 : index
    %c0_19 = arith.constant 0 : index
    %93 = vector.load %arg2[%c2, %c0_18, %c0_19] : memref<3x8x128xf32, #tpu.memory_space<vmem>>, vector<1x8x128xf32>
    %94 = vector.shape_cast %93 : vector<1x8x128xf32> to vector<8x128xf32>
    %cst_20 = arith.constant 1.000000e+00 : f32
    %95 = vector.broadcast %cst_20 : f32 to vector<8x128xf32>
    %cst_21 = arith.constant 0.000000e+00 : f32
    %96 = vector.broadcast %cst_21 : f32 to vector<8x128xf32>
    %97 = vector.extract_strided_slice %2 {offsets = [0, 2], sizes = [1, 1], strides = [1, 1]} : vector<4x6xf32> to vector<1x1xf32>
    %98 = vector.shape_cast %97 : vector<1x1xf32> to vector<1x1xf32>
    %99 = vector.broadcast %98 : vector<1x1xf32> to vector<8x128xf32>
    %100 = arith.select %4, %99, %95 : vector<8x128xi1>, vector<8x128xf32>
    %101 = vector.extract_strided_slice %2 {offsets = [0, 5], sizes = [1, 1], strides = [1, 1]} : vector<4x6xf32> to vector<1x1xf32>
    %102 = vector.shape_cast %101 : vector<1x1xf32> to vector<1x1xf32>
    %103 = vector.broadcast %102 : vector<1x1xf32> to vector<8x128xf32>
    %104 = arith.select %4, %103, %96 : vector<8x128xi1>, vector<8x128xf32>
    %105 = vector.extract_strided_slice %2 {offsets = [1, 2], sizes = [1, 1], strides = [1, 1]} : vector<4x6xf32> to vector<1x1xf32>
    %106 = vector.shape_cast %105 : vector<1x1xf32> to vector<1x1xf32>
    %107 = vector.broadcast %106 : vector<1x1xf32> to vector<8x128xf32>
    %108 = arith.select %6, %107, %100 : vector<8x128xi1>, vector<8x128xf32>
    %109 = vector.extract_strided_slice %2 {offsets = [1, 5], sizes = [1, 1], strides = [1, 1]} : vector<4x6xf32> to vector<1x1xf32>
    %110 = vector.shape_cast %109 : vector<1x1xf32> to vector<1x1xf32>
    %111 = vector.broadcast %110 : vector<1x1xf32> to vector<8x128xf32>
    %112 = arith.select %6, %111, %104 : vector<8x128xi1>, vector<8x128xf32>
    %113 = vector.extract_strided_slice %2 {offsets = [2, 2], sizes = [1, 1], strides = [1, 1]} : vector<4x6xf32> to vector<1x1xf32>
    %114 = vector.shape_cast %113 : vector<1x1xf32> to vector<1x1xf32>
    %115 = vector.broadcast %114 : vector<1x1xf32> to vector<8x128xf32>
    %116 = arith.select %8, %115, %108 : vector<8x128xi1>, vector<8x128xf32>
    %117 = vector.extract_strided_slice %2 {offsets = [2, 5], sizes = [1, 1], strides = [1, 1]} : vector<4x6xf32> to vector<1x1xf32>
    %118 = vector.shape_cast %117 : vector<1x1xf32> to vector<1x1xf32>
    %119 = vector.broadcast %118 : vector<1x1xf32> to vector<8x128xf32>
    %120 = arith.select %8, %119, %112 : vector<8x128xi1>, vector<8x128xf32>
    %121 = vector.extract_strided_slice %2 {offsets = [3, 2], sizes = [1, 1], strides = [1, 1]} : vector<4x6xf32> to vector<1x1xf32>
    %122 = vector.shape_cast %121 : vector<1x1xf32> to vector<1x1xf32>
    %123 = vector.broadcast %122 : vector<1x1xf32> to vector<8x128xf32>
    %124 = arith.select %10, %123, %116 : vector<8x128xi1>, vector<8x128xf32>
    %125 = vector.extract_strided_slice %2 {offsets = [3, 5], sizes = [1, 1], strides = [1, 1]} : vector<4x6xf32> to vector<1x1xf32>
    %126 = vector.shape_cast %125 : vector<1x1xf32> to vector<1x1xf32>
    %127 = vector.broadcast %126 : vector<1x1xf32> to vector<8x128xf32>
    %128 = arith.select %10, %127, %120 : vector<8x128xi1>, vector<8x128xf32>
    %129 = arith.mulf %94, %124 : vector<8x128xf32>
    %130 = arith.addf %129, %128 : vector<8x128xf32>
    %c2_22 = arith.constant 2 : index
    %c0_23 = arith.constant 0 : index
    %c0_24 = arith.constant 0 : index
    %131 = vector.load %arg4[%c2_22, %c0_23, %c0_24] : memref<3x8x128xf32, #tpu.memory_space<vmem>>, vector<1x8x128xf32>
    %132 = vector.shape_cast %131 : vector<1x8x128xf32> to vector<8x128xf32>
    %133 = vector.shape_cast %130 : vector<8x128xf32> to vector<1x8x128xf32>
    tpu.vector_store %arg4[%c2_22, %c0_23, %c0_24], %133 {strides = array<i32>} : memref<3x8x128xf32, #tpu.memory_space<vmem>>, vector<1x8x128xf32>,
    return
  }
  func.func @transform_0(%arg0: i32) -> (i32, i32, i32) {
    %c0_i32 = arith.constant 0 : i32
    %c0_i32_0 = arith.constant 0 : i32
    %c0_i32_1 = arith.constant 0 : i32
    return %c0_i32, %arg0, %c0_i32_0 : i32, i32, i32
  }
  func.func @transform_1(%arg0: i32) -> (i32, i32, i32) {
    %c0_i32 = arith.constant 0 : i32
    %c0_i32_0 = arith.constant 0 : i32
    %c0_i32_1 = arith.constant 0 : i32
    return %c0_i32, %arg0, %c0_i32_0 : i32, i32, i32
  }
  func.func @transform_2(%arg0: i32) -> (i32, i32) {
    %c0_i32 = arith.constant 0 : i32
    %c0_i32_0 = arith.constant 0 : i32
    %c0_i32_1 = arith.constant 0 : i32
    return %c0_i32, %c0_i32_0 : i32, i32
  }
  func.func @transform_3(%arg0: i32) -> (i32, i32, i32) {
    %c0_i32 = arith.constant 0 : i32
    %c0_i32_0 = arith.constant 0 : i32
    %c0_i32_1 = arith.constant 0 : i32
    return %c0_i32, %arg0, %c0_i32_0 : i32, i32, i32
  }
}

</mosaic_0001>

<llo_original>
// kernel: tpu_custom_call.1
$region0: #{tpu_custom_call.1}
  #allocation0 [shape = 'u32[]', space=smem, size = 0x4, offset = 0x4, fixed_abs, tag = 'smem constant byte address 0x4 - core index']
  #allocation1 [shape = 'u32[144,128]{1,0:T(1,128)}', space=vmem, size = 0x12000, scoped, tag = 'internal scratch']
  %s0 = inlined_call_operand.hbm [shape: s32[1,8,128], index: 0, kind: input, shape index: {}]
  %s1 = inlined_call_operand.hbm [shape: f32[3,8,128], index: 1, kind: input, shape index: {}]
  %s2 = inlined_call_operand.vmem [shape: f32[4,6], index: 2, kind: input, shape index: {}]
  %s3 = inlined_call_operand.hbm [shape: f32[3,8,128], index: 3, kind: output, shape index: {}]
  %s4 = sld [smem:[#allocation0]]
  $region30: #{tpu_custom_call.1} parent=0
    _
  %s6 = ssub.s32 1, %s4
  %s7 = scalar_select 0, %s6, %s4
  $region1: #{tpu_custom_call.1} parent=0
    #allocation2 [shape = 'u8[4096]{0}', space=vmem, size = 0x1000, scoped, tag = 'input window, operand 0, single buffered']
    #allocation3 [shape = 's32[1]{0}', space=sflag, size = 0x4, scoped, tag = 'scoped memory for tpu_custom_call.1']
    #allocation4 [shape = 's32[1]{0}', space=sflag, size = 0x4, scoped, tag = 'scoped memory for tpu_custom_call.1']
    #allocation5 [shape = 'u8[12288]{0}', space=vmem, size = 0x3000, scoped, tag = 'input window, operand 1, single buffered']
    #allocation6 [shape = 's32[1]{0}', space=sflag, size = 0x4, scoped, tag = 'scoped memory for tpu_custom_call.1']
    #allocation7 [shape = 'u8[12288]{0}', space=vmem, size = 0x3000, scoped, tag = 'output window, operand 0, single buffered']
    %8 = vsyncpa [#allocation3], 0
    %9 = vsyncpa [#allocation6], 0
    %10 = vsyncpa [#allocation4], 0
    // Predicated region
    $region2: #{tpu_custom_call.1} parent=1 // pred_check
      _
    $region3: #{tpu_custom_call.1} parent=1 // pred_check_branch
      %12 = sbr.rel (0) target = $region5
    $region4: #{tpu_custom_call.1} parent=1 // pred_region
      %s14 = ssub.s32 128, 128
      %15 = vsyncadd [#allocation3], %s14
      %s17 = sshll.u32 [#allocation2], 4
      %s18 = int_to_ptr.vmem [resolvable:$true] %s17
      %20 = dma.hbm_to_vmem [thread:$0]  %s0, 128, %s18, [#allocation3]
    $region5: #{tpu_custom_call.1} parent=1 // pred_fallthru
      _
    // Predicated region
    $region6: #{tpu_custom_call.1} parent=1 // pred_check
      _
    $region7: #{tpu_custom_call.1} parent=1 // pred_check_branch
      %22 = sbr.rel (0) target = $region9
    $region8: #{tpu_custom_call.1} parent=1 // pred_region
      %s24 = ssub.s32 384, 384
      %25 = vsyncadd [#allocation6], %s24
      %s26 = sshll.u32 [#allocation5], 4
      %s27 = int_to_ptr.vmem [resolvable:$true] %s26
      %32 = dma.hbm_to_vmem [thread:$0]  %s1, 384, %s27, [#allocation6], 128, 128, 8
    $region9: #{tpu_custom_call.1} parent=1 // pred_fallthru
      _
    // Predicated region
    $region10: #{tpu_custom_call.1} parent=1 // pred_check
      _
    $region11: #{tpu_custom_call.1} parent=1 // pred_check_branch
      %34 = sbr.rel (0) target = $region13
    $region12: #{tpu_custom_call.1} parent=1 // pred_region
      _
    $region13: #{tpu_custom_call.1} parent=1 // pred_fallthru
      _
    // Predicated region
    $region14: #{tpu_custom_call.1} parent=1 // pred_check
      _
    $region15: #{tpu_custom_call.1} parent=1 // pred_check_branch
      %36 = sbr.rel (0) target = $region17
    $region16: #{tpu_custom_call.1} parent=1 // pred_region
      %37 = dma.done [#allocation3], 128
    $region17: #{tpu_custom_call.1} parent=1 // pred_fallthru
      _
    // Predicated region
    $region18: #{tpu_custom_call.1} parent=1 // pred_check
      _
    $region19: #{tpu_custom_call.1} parent=1 // pred_check_branch
      %39 = sbr.rel (0) target = $region21
    $region20: #{tpu_custom_call.1} parent=1 // pred_region
      %40 = dma.done [#allocation6], 384
    $region21: #{tpu_custom_call.1} parent=1 // pred_fallthru
      _
    %v41 = vld [vmem:[#allocation2] sm:$0xff]
    %v42 = vld [vmem:[%s2] sm:$0xf]
    %vm43 = vcmp.eq.s32.totalorder %v41, 0
    %vm44 = vcmp.eq.s32.totalorder %v41, 1
    %vm45 = vcmp.eq.s32.totalorder %v41, 2
    %vm46 = vcmp.eq.s32.totalorder %v41, 3
    %v47 = vld [vmem:[#allocation5] sm:$0xff]
    %s49 = vtos %v42
    %v50 = vstv %s49
    %v52 = vsel %vm43, %v50, 1.0
    %53 = vrot.lane.b32.xlu0 %v42, 125
    %v54 = vpop.permute.xlu0 %53
    %s55 = vtos %v54
    %v56 = vstv %s55
    %v58 = vsel %vm43, %v56, 0.0
    %v59 = vrot.slane %v42, 1
    %s60 = vtos %v59
    %v61 = vstv %s60
    %v63 = vsel %vm44, %v61, %v52
    %64 = vrot.lane.b32.xlu0 %v59, 125
    %v65 = vpop.permute.xlu0 %64
    %s66 = vtos %v65
    %v67 = vstv %s66
    %v69 = vsel %vm44, %v67, %v58
    %v70 = vrot.slane %v42, 2
    %s71 = vtos %v70
    %v72 = vstv %s71
    %v74 = vsel %vm45, %v72, %v63
    %75 = vrot.lane.b32.xlu0 %v70, 125
    %v76 = vpop.permute.xlu0 %75
    %s77 = vtos %v76
    %v78 = vstv %s77
    %v80 = vsel %vm45, %v78, %v69
    %v81 = vrot.slane %v42, 3
    %s82 = vtos %v81
    %v83 = vstv %s82
    %v85 = vsel %vm46, %v83, %v74
    %86 = vrot.lane.b32.xlu0 %v81, 125
    %v87 = vpop.permute.xlu0 %86
    %s88 = vtos %v87
    %v89 = vstv %s88
    %v91 = vsel %vm46, %v89, %v80
    %v92 = vmul.f32 %v47, %v85
    %v93 = vadd.f32 %v92, %v91
    %94 = vst [vmem:[#allocation7] sm:$0xff] %v93
    %s95 = scalar_lea.vmem [#allocation5], 8
    %v96 = vld [vmem:[%s95] sm:$0xff]
    %97 = vrot.lane.b32.xlu0 %v42, 127
    %v98 = vpop.permute.xlu0 %97
    %s99 = vtos %v98
    %v100 = vstv %s99
    %v102 = vsel %vm43, %v100, 1.0
    %103 = vrot.lane.b32.xlu0 %v42, 124
    %v104 = vpop.permute.xlu0 %103
    %s105 = vtos %v104
    %v106 = vstv %s105
    %v108 = vsel %vm43, %v106, 0.0
    %109 = vrot.lane.b32.xlu0 %v59, 127
    %v110 = vpop.permute.xlu0 %109
    %s111 = vtos %v110
    %v112 = vstv %s111
    %v114 = vsel %vm44, %v112, %v102
    %115 = vrot.lane.b32.xlu0 %v59, 124
    %v116 = vpop.permute.xlu0 %115
    %s117 = vtos %v116
    %v118 = vstv %s117
    %v120 = vsel %vm44, %v118, %v108
    %121 = vrot.lane.b32.xlu0 %v70, 127
    %v122 = vpop.permute.xlu0 %121
    %s123 = vtos %v122
    %v124 = vstv %s123
    %v126 = vsel %vm45, %v124, %v114
    %127 = vrot.lane.b32.xlu0 %v70, 124
    %v128 = vpop.permute.xlu0 %127
    %s129 = vtos %v128
    %v130 = vstv %s129
    %v132 = vsel %vm45, %v130, %v120
    %133 = vrot.lane.b32.xlu0 %v81, 127
    %v134 = vpop.permute.xlu0 %133
    %s135 = vtos %v134
    %v136 = vstv %s135
    %v138 = vsel %vm46, %v136, %v126
    %139 = vrot.lane.b32.xlu0 %v81, 124
    %v140 = vpop.permute.xlu0 %139
    %s141 = vtos %v140
    %v142 = vstv %s141
    %v144 = vsel %vm46, %v142, %v132
    %v145 = vmul.f32 %v96, %v138
    %v146 = vadd.f32 %v145, %v144
    %s147 = scalar_lea.vmem [#allocation7], 8
    %148 = vst [vmem:[%s147] sm:$0xff] %v146
    %s149 = scalar_lea.vmem [#allocation5], 16
    %v150 = vld [vmem:[%s149] sm:$0xff]
    %151 = vrot.lane.b32.xlu0 %v42, 126
    %v152 = vpop.permute.xlu0 %151
    %s153 = vtos %v152
    %v154 = vstv %s153
    %v156 = vsel %vm43, %v154, 1.0
    %157 = vrot.lane.b32.xlu0 %v42, 123
    %v158 = vpop.permute.xlu0 %157
    %s159 = vtos %v158
    %v160 = vstv %s159
    %v162 = vsel %vm43, %v160, 0.0
    %163 = vrot.lane.b32.xlu0 %v59, 126
    %v164 = vpop.permute.xlu0 %163
    %s165 = vtos %v164
    %v166 = vstv %s165
    %v168 = vsel %vm44, %v166, %v156
    %169 = vrot.lane.b32.xlu0 %v59, 123
    %v170 = vpop.permute.xlu0 %169
    %s171 = vtos %v170
    %v172 = vstv %s171
    %v174 = vsel %vm44, %v172, %v162
    %175 = vrot.lane.b32.xlu0 %v70, 126
    %v176 = vpop.permute.xlu0 %175
    %s177 = vtos %v176
    %v178 = vstv %s177
    %v180 = vsel %vm45, %v178, %v168
    %181 = vrot.lane.b32.xlu0 %v70, 123
    %v182 = vpop.permute.xlu0 %181
    %s183 = vtos %v182
    %v184 = vstv %s183
    %v186 = vsel %vm45, %v184, %v174
    %187 = vrot.lane.b32.xlu0 %v81, 126
    %v188 = vpop.permute.xlu0 %187
    %s189 = vtos %v188
    %v190 = vstv %s189
    %v192 = vsel %vm46, %v190, %v180
    %193 = vrot.lane.b32.xlu0 %v81, 123
    %v194 = vpop.permute.xlu0 %193
    %s195 = vtos %v194
    %v196 = vstv %s195
    %v198 = vsel %vm46, %v196, %v186
    %v199 = vmul.f32 %v150, %v192
    %v200 = vadd.f32 %v199, %v198
    %s201 = scalar_lea.vmem [#allocation7], 16
    %202 = vst [vmem:[%s201] sm:$0xff] %v200
    // Predicated region
    $region22: #{tpu_custom_call.1} parent=1 // pred_check
      _
    $region23: #{tpu_custom_call.1} parent=1 // pred_check_branch
      %204 = sbr.rel (0) target = $region25
    $region24: #{tpu_custom_call.1} parent=1 // pred_region
      %s206 = ssub.s32 384, 384
      %207 = vsyncadd [#allocation4], %s206
      %s208 = sshll.u32 [#allocation7], 4
      %s209 = int_to_ptr.vmem [resolvable:$true] %s208
      %214 = dma.vmem_to_hbm [thread:$0]  %s209, 384, %s3, [#allocation4], 128, 128, 8
    $region25: #{tpu_custom_call.1} parent=1 // pred_fallthru
      _
    // Predicated region
    $region26: #{tpu_custom_call.1} parent=1 // pred_check
      _
    $region27: #{tpu_custom_call.1} parent=1 // pred_check_branch
      %216 = sbr.rel (0) target = $region29
    $region28: #{tpu_custom_call.1} parent=1 // pred_region
      %217 = dma.done [#allocation4], 384
    $region29: #{tpu_custom_call.1} parent=1 // pred_fallthru
      _
    %218 = vsyncpa [#allocation3], 1
    %219 = vsyncpa [#allocation6], 1
    %220 = vsyncpa [#allocation4], 1

</llo_original>
